<compile_context>
chip_gen: v6e
topology: v6e:2x2x1
jax: 0.10.0
libtpu: 0.0.40
codegen_flags: <defaults>
</compile_context>

<pallas_src>
import jax
import jax.numpy as jnp
from jax.experimental import pallas as pl
from jax.experimental.pallas import tpu as pltpu


def _round_up(x, m):
    return ((x + m - 1) // m) * m


def _cdiv(a, b):
    return -(-a // b)


def _sublane_align(dtype):
    # f32 -> 8, bf16 -> 16, int8/fp8 -> 32 sublane rows per vreg tile.
    return {1: 32, 2: 16, 4: 8}.get(jnp.dtype(dtype).itemsize, 8)


def _vmem_capacity_bytes(default=64 * 1024 * 1024):
    """Physical VMEM per TensorCore; fall back to the most restrictive (v7x)."""
    try:
        cap = getattr(pltpu.get_tpu_info(), "vmem_capacity_bytes", None)
        if cap:
            return int(cap)
    except Exception:
        pass
    return default


def _estimate_vmem_bytes(tb, Sp, Dp, hid1, hid2, hid3, s_bytes, w_bytes,
                         weight_bufs=2):
    """Rough per-step working set: double-buffered streams + resident weights
    + live f32 activation temporaries."""
    M = tb * Sp
    stream = 2 * M * Dp * s_bytes          # s tile (double buffered)
    stream += 2 * tb * hid1 * 4            # qh tile
    stream += 2 * tb * Sp * 4              # score slab
    weights = weight_bufs * ((Dp * hid1 + hid1 * hid2 + hid2 * hid3) * w_bytes
                             + (hid1 + hid2 + 2 * hid3) * 4)
    acts = M * (2 * hid1 + hid2 + hid3) * 4
    return stream + weights + acts


def _mlp_kernel(qh_ref, s_ref, w1s_ref, w2_ref, b2_ref, w3_ref, b3_ref,
                w4_ref, o_ref):
    """Fused MLP for a tile of `tb` batch rows x Sp sentences.

    qh_ref : (tb, 1, hid1)   question projection q @ w1_q + b1 (f32)
    s_ref  : (tb, Sp, Dp)    sentence embeddings (f32 or bf16)
    w4_ref : (1, hid3)       last-layer weight stored transposed (f32)
    o_ref  : (tb, 1, Sp)     lane-dense scores (f32)
    """
    tb, Sp, Dp = s_ref.shape
    hid1 = w1s_ref.shape[1]
    hid3 = w4_ref.shape[1]
    M = tb * Sp

    # Layer 1: sentence half on the MXU; question half broadcast-added.
    # Sp is sublane-aligned for the streamed dtype, so these reshapes are
    # copy-free views.
    s2d = s_ref[...].reshape(M, Dp)
    h = jnp.dot(s2d, w1s_ref[...], preferred_element_type=jnp.float32)
    h = h.reshape(tb, Sp, hid1) + qh_ref[...]            # (tb,1,hid1) bcast
    h = jnp.maximum(h, 0.0).reshape(M, hid1)

    # Layers 2 & 3: f32 accumulation; operands follow the weight dtype.
    h = jnp.dot(h.astype(w2_ref.dtype), w2_ref[...],
                preferred_element_type=jnp.float32) + b2_ref[...]
    h = jnp.maximum(h, 0.0)
    h = jnp.dot(h.astype(w3_ref.dtype), w3_ref[...],
                preferred_element_type=jnp.float32) + b3_ref[...]
    h = jnp.maximum(h, 0.0)

    # Layer 4 (out_features == 1): VPU multiply + cross-lane reduce instead of
    # a 1-lane-wide MXU matmul.  (b4 is added in the wrapper epilogue.)
    p = h.reshape(tb, Sp, hid3) * w4_ref[...]            # (1,hid3) bcast
    o = jnp.sum(p, axis=-1)                              # (tb, Sp)
    o_ref[...] = o.reshape(tb, 1, Sp).astype(o_ref.dtype)


_FOLD_MIN_SENTENCES = 512    # fold batch==1 workloads above this many rows
_FOLD_CHUNK_ROWS = 256       # pseudo-batch chunk size (rows)
_MIN_ROWS_PER_STEP = 256     # never split below this many MLP rows per step


def qa_model2_forward(q, s, params, *, rows_per_step=2048,
                      compute_dtype=jnp.bfloat16):
    """JAX/Pallas equivalent of QAModel2.forward.

    q: (batch, w2v_dim) float32
    s: (batch, num_sentence, w2v_dim) float32
    returns: (batch, num_sentence) float32
    """
    w1, b1, w2, b2, w3, b3, w4, b4 = params
    batch, num_sentence, w2v_dim = s.shape
    assert q.shape == (batch, w2v_dim)
    assert w1.shape[0] == 2 * w2v_dim
    hid1, hid2, hid3 = w1.shape[1], w2.shape[1], w3.shape[1]

    # Split layer 1: first w2v_dim input features are the broadcast question,
    # the remaining w2v_dim are the sentence embedding.
    w1_q = w1[:w2v_dim]
    w1_s = w1[w2v_dim:]

    # Tiny per-batch-row question projection, computed once in f32.
    qh = q.astype(jnp.float32) @ w1_q.astype(jnp.float32)
    qh = qh + b1.astype(jnp.float32).reshape(1, hid1)
    qh = qh.reshape(batch, 1, hid1)

    align = _sublane_align(compute_dtype)

    # ---- pseudo-batch fold: batch == 1 with many sentences -> split the
    # sentence axis into chunks treated as extra batch rows so the grid has
    # multiple (TensorCore-shardable) steps.
    s_eff, qh_eff = s, qh
    B_eff, S_eff = batch, num_sentence
    folded = False
    if batch == 1 and num_sentence >= _FOLD_MIN_SENTENCES:
        Sc = _round_up(_FOLD_CHUNK_ROWS, align)
        n_chunks = _cdiv(num_sentence, Sc)
        s_eff = jnp.pad(s, ((0, 0), (0, n_chunks * Sc - num_sentence), (0, 0)))
        s_eff = s_eff.reshape(n_chunks, Sc, w2v_dim)
        qh_eff = jnp.broadcast_to(qh, (n_chunks, 1, hid1))
        B_eff, S_eff = n_chunks, Sc
        folded = True

    # ---- padded geometry ----------------------------------------------------
    Sp = _round_up(S_eff, align)             # sublane-align sentences
    Dp = _round_up(w2v_dim, 128)             # lane-align the streamed minor dim
    if Dp > (w2v_dim * 4) // 3:              # only if the pad overhead is modest
        Dp = w2v_dim

    s_bytes = jnp.dtype(compute_dtype).itemsize
    cap = _vmem_capacity_bytes()
    tile_budget = min(cap // 2, 32 * 1024 * 1024)

    # batch rows per grid step: target rows_per_step MLP rows, then shrink to
    # the per-generation VMEM working-set budget.
    tb = max(1, min(B_eff, rows_per_step // max(Sp, 1)))
    while tb > 1 and _estimate_vmem_bytes(tb, Sp, Dp, hid1, hid2, hid3,
                                          s_bytes, s_bytes) > tile_budget:
        tb = max(1, tb // 2)

    steps = _cdiv(B_eff, tb)
    # Force >= 2 steps only when each step keeps >= _MIN_ROWS_PER_STEP rows
    # (splitting tiny problems just pays per-step overhead).
    if steps < 2 and B_eff > 1:
        tb_half = _cdiv(B_eff, 2)
        if tb_half * Sp >= _MIN_ROWS_PER_STEP:
            tb = tb_half
            steps = _cdiv(B_eff, tb)
    # Best-effort nudge toward an even, balanced step count (v7x dual-TC).
    if steps > 1 and steps % 2 == 1:
        tb_try = _cdiv(B_eff, steps + 1)
        if tb_try * Sp >= _MIN_ROWS_PER_STEP and _cdiv(B_eff, tb_try) % 2 == 0:
            tb = tb_try
            steps = _cdiv(B_eff, tb)

    Bp = tb * steps
    grid = (steps,)

    vmem_need = _estimate_vmem_bytes(tb, Sp, Dp, hid1, hid2, hid3,
                                     s_bytes, s_bytes)
    vmem_limit = int(min(cap - (2 << 20),
                         max(32 << 20, vmem_need * 3 // 2 + (8 << 20))))

    # ---- pad & cast only what is strictly needed ----------------------------
    s_in = s_eff.astype(compute_dtype)
    pad_b, pad_s, pad_d = Bp - B_eff, Sp - S_eff, Dp - w2v_dim
    if pad_b or pad_s or pad_d:
        s_in = jnp.pad(s_in, ((0, pad_b), (0, pad_s), (0, pad_d)))
    qh_in = qh_eff
    if pad_b:
        qh_in = jnp.pad(qh_in, ((0, pad_b), (0, 0), (0, 0)))

    w1_s_in = w1_s.astype(compute_dtype)
    if pad_d:
        w1_s_in = jnp.pad(w1_s_in, ((0, pad_d), (0, 0)))
    w2_in = w2.astype(compute_dtype)
    w3_in = w3.astype(compute_dtype)
    b2_in = b2.astype(jnp.float32).reshape(1, hid2)
    b3_in = b3.astype(jnp.float32).reshape(1, hid3)
    w4_in = w4.astype(jnp.float32).reshape(1, hid3)     # stored transposed
    b4_scalar = jnp.reshape(b4, ()).astype(jnp.float32)

    def batch_tile(i):
        return (i, 0, 0)

    def fixed(i):
        return (0, 0)

    def build(single_buffer_weights):
        # Constant-index weights only need one VMEM buffer; fall back to the
        # default double buffering if this jax version rejects Buffered(1).
        wkw = dict(pipeline_mode=pl.Buffered(1)) if single_buffer_weights else {}
        in_specs = [
            pl.BlockSpec((tb, 1, hid1), batch_tile),        # qh
            pl.BlockSpec((tb, Sp, Dp), batch_tile),         # s tile (streamed)
            pl.BlockSpec((Dp, hid1), fixed, **wkw),         # w1_s
            pl.BlockSpec((hid1, hid2), fixed, **wkw),       # w2
            pl.BlockSpec((1, hid2), fixed, **wkw),          # b2
            pl.BlockSpec((hid2, hid3), fixed, **wkw),       # w3
            pl.BlockSpec((1, hid3), fixed, **wkw),          # b3
            pl.BlockSpec((1, hid3), fixed, **wkw),          # w4 (transposed)
        ]
        return pl.pallas_call(
            _mlp_kernel,
            out_shape=jax.ShapeDtypeStruct((Bp, 1, Sp), jnp.float32),
            grid=grid,
            in_specs=in_specs,
            out_specs=pl.BlockSpec((tb, 1, Sp), batch_tile),
            compiler_params=pltpu.CompilerParams(
                dimension_semantics=("parallel",),
                vmem_limit_bytes=vmem_limit),
        )

    args = (qh_in, s_in, w1_s_in, w2_in, b2_in, w3_in, b3_in, w4_in)
    try:
        out = build(True)(*args)      # single-buffered resident weights
    except Exception:
        out = build(False)(*args)     # fallback: default buffering

    out = out.reshape(Bp, Sp)[:B_eff, :S_eff]
    if folded:
        out = out.reshape(1, B_eff * S_eff)[:, :num_sentence]
    # b4 (true scalar) folded into the epilogue (== x.view(batch, -1) + b4).
    return out + b4_scalar


def init_params(key, w2v_dim, hid1, hid2, hid3):
    """Deterministic init matching nn.Linear shapes (weights stored [in, out]
    so the kernel computes x @ W)."""
    def linear(k, fan_in, fan_out):
        kw, kb = jax.random.split(k)
        bound = 1.0 / jnp.sqrt(jnp.float32(fan_in))
        w = jax.random.uniform(kw, (fan_in, fan_out), jnp.float32, -bound, bound)
        b = jax.random.uniform(kb, (1, fan_out), jnp.float32, -bound, bound)
        return w, b

    k1, k2, k3, k4 = jax.random.split(key, 4)
    w1, b1 = linear(k1, w2v_dim * 2, hid1)
    w2, b2 = linear(k2, hid1, hid2)
    w3, b3 = linear(k3, hid2, hid3)
    w4, b4 = linear(k4, hid3, 1)
    return (w1, b1, w2, b2, w3, b3, w4, b4)


def reference_forward(q, s, params):
    """Pure-JAX reference (mirrors the PyTorch forward)."""
    w1, b1, w2, b2, w3, b3, w4, b4 = params
    batch, num_sentence, w2v_dim = s.shape
    q_stacked = jnp.broadcast_to(q[:, None, :], (batch, num_sentence, w2v_dim))
    x = jnp.concatenate([q_stacked, s], axis=2)
    x = jnp.maximum(x @ w1 + b1[0], 0.0)
    x = jnp.maximum(x @ w2 + b2[0], 0.0)
    x = jnp.maximum(x @ w3 + b3[0], 0.0)
    x = x @ w4 + b4[0]
    return x.reshape(batch, -1)


if __name__ == "__main__":
    key = jax.random.PRNGKey(0)

    # (batch, num_sentence, w2v_dim, hid1, hid2, hid3, compute_dtype, atol)
    configs = [
        (2, 8, 32, 64, 64, 32, jnp.bfloat16, 6e-2),     # default bf16 path
        (2, 8, 32, 64, 64, 32, jnp.float32, 2e-4),      # exact f32 path
        (1, 600, 120, 64, 64, 32, jnp.bfloat16, 6e-2),  # fold + w2v pad + 2-step grid
    ]

    for idx, (batch, ns, w2v, h1, h2, h3, cdt, tol) in enumerate(configs):
        kp, kq, ks, key = jax.random.split(key, 4)
        params = init_params(kp, w2v, h1, h2, h3)
        q = jax.random.normal(kq, (batch, w2v), jnp.float32)
        s = jax.random.normal(ks, (batch, ns, w2v), jnp.float32)

        out = qa_model2_forward(q, s, params, compute_dtype=cdt)
        out = jax.block_until_ready(out)

        ref = reference_forward(q, s, params)
        assert out.shape == (batch, ns), (idx, out.shape)
        err = float(jnp.max(jnp.abs(out - ref)))
        assert err <= tol, (idx, err, tol)

    print("KERNEL_OK")
</pallas_src>

<mosaic_0001>
module attributes {stable_mosaic.version = 11 : i64} {
  func.func @_mlp_kernel(%arg0: i32, %arg1: memref<2x1x64xf32, #tpu.memory_space<vmem>>, %arg2: memref<2x16x32xbf16, #tpu.memory_space<vmem>>, %arg3: memref<32x64xbf16, #tpu.memory_space<vmem>>, %arg4: memref<64x64xbf16, #tpu.memory_space<vmem>>, %arg5: memref<1x64xf32, #tpu.memory_space<vmem>>, %arg6: memref<64x32xbf16, #tpu.memory_space<vmem>>, %arg7: memref<1x32xf32, #tpu.memory_space<vmem>>, %arg8: memref<1x32xf32, #tpu.memory_space<vmem>>, %arg9: memref<2x1x16xf32, #tpu.memory_space<vmem>>) attributes {dimension_semantics = [#tpu.dimension_semantics<parallel>], iteration_bounds = array<i64: 1>, scalar_prefetch = 0 : i64, scratch_operands = 0 : i64, tpu.core_type = #tpu.core_type<tc>, window_params = [{transform_indices = @transform_0, window_bounds = array<i64: 2, 1, 64>}, {transform_indices = @transform_1, window_bounds = array<i64: 2, 16, 32>}, {pipeline_mode = #tpu.pipeline_mode<synchronous>, transform_indices = @transform_2, window_bounds = array<i64: 32, 64>}, {pipeline_mode = #tpu.pipeline_mode<synchronous>, transform_indices = @transform_3, window_bounds = array<i64: 64, 64>}, {pipeline_mode = #tpu.pipeline_mode<synchronous>, transform_indices = @transform_4, window_bounds = array<i64: 1, 64>}, {pipeline_mode = #tpu.pipeline_mode<synchronous>, transform_indices = @transform_5, window_bounds = array<i64: 64, 32>}, {pipeline_mode = #tpu.pipeline_mode<synchronous>, transform_indices = @transform_6, window_bounds = array<i64: 1, 32>}, {pipeline_mode = #tpu.pipeline_mode<synchronous>, transform_indices = @transform_7, window_bounds = array<i64: 1, 32>}, {transform_indices = @transform_8, window_bounds = array<i64: 2, 1, 16>}]} {
    %c0 = arith.constant 0 : index
    %c0_0 = arith.constant 0 : index
    %c0_1 = arith.constant 0 : index
    %0 = vector.load %arg2[%c0, %c0_0, %c0_1] : memref<2x16x32xbf16, #tpu.memory_space<vmem>>, vector<2x16x32xbf16>
    %1 = vector.shape_cast %0 : vector<2x16x32xbf16> to vector<32x32xbf16>
    %c0_2 = arith.constant 0 : index
    %c0_3 = arith.constant 0 : index
    %2 = vector.load %arg3[%c0_2, %c0_3] : memref<32x64xbf16, #tpu.memory_space<vmem>>, vector<32x64xbf16>
    %cst = arith.constant dense<0.000000e+00> : vector<32x64xf32>
    %3 = tpu.matmul %1, %2, %cst {dimension_numbers = #tpu.dot_dimension_numbers<[1], [0], [0], [1], [0, 0, 1, 1], [], []>} : vector<32x32xbf16>, vector<32x64xbf16>, vector<32x64xf32> -> vector<32x64xf32>
    %4 = vector.shape_cast %3 : vector<32x64xf32> to vector<2x16x64xf32>
    %c0_4 = arith.constant 0 : index
    %c0_5 = arith.constant 0 : index
    %c0_6 = arith.constant 0 : index
    %5 = vector.load %arg1[%c0_4, %c0_5, %c0_6] : memref<2x1x64xf32, #tpu.memory_space<vmem>>, vector<2x1x64xf32>
    %6 = vector.broadcast %5 : vector<2x1x64xf32> to vector<2x16x64xf32>
    %7 = arith.addf %4, %6 : vector<2x16x64xf32>
    %cst_7 = arith.constant 0.000000e+00 : f32
    %8 = vector.broadcast %cst_7 : f32 to vector<2x16x64xf32>
    %9 = arith.maximumf %7, %8 : vector<2x16x64xf32>
    %10 = vector.shape_cast %9 : vector<2x16x64xf32> to vector<32x64xf32>
    %11 = arith.truncf %10 : vector<32x64xf32> to vector<32x64xbf16>
    %c0_8 = arith.constant 0 : index
    %c0_9 = arith.constant 0 : index
    %12 = vector.load %arg4[%c0_8, %c0_9] : memref<64x64xbf16, #tpu.memory_space<vmem>>, vector<64x64xbf16>
    %cst_10 = arith.constant dense<0.000000e+00> : vector<32x64xf32>
    %13 = tpu.matmul %11, %12, %cst_10 {dimension_numbers = #tpu.dot_dimension_numbers<[1], [0], [0], [1], [0, 0, 1, 1], [], []>} : vector<32x64xbf16>, vector<64x64xbf16>, vector<32x64xf32> -> vector<32x64xf32>
    %c0_11 = arith.constant 0 : index
    %c0_12 = arith.constant 0 : index
    %14 = vector.load %arg5[%c0_11, %c0_12] : memref<1x64xf32, #tpu.memory_space<vmem>>, vector<1x64xf32>
    %15 = vector.broadcast %14 : vector<1x64xf32> to vector<32x64xf32>
    %16 = arith.addf %13, %15 : vector<32x64xf32>
    %cst_13 = arith.constant 0.000000e+00 : f32
    %17 = vector.broadcast %cst_13 : f32 to vector<32x64xf32>
    %18 = arith.maximumf %16, %17 : vector<32x64xf32>
    %19 = arith.truncf %18 : vector<32x64xf32> to vector<32x64xbf16>
    %c0_14 = arith.constant 0 : index
    %c0_15 = arith.constant 0 : index
    %20 = vector.load %arg6[%c0_14, %c0_15] : memref<64x32xbf16, #tpu.memory_space<vmem>>, vector<64x32xbf16>
    %cst_16 = arith.constant dense<0.000000e+00> : vector<32x32xf32>
    %21 = tpu.matmul %19, %20, %cst_16 {dimension_numbers = #tpu.dot_dimension_numbers<[1], [0], [0], [1], [0, 0, 1, 1], [], []>} : vector<32x64xbf16>, vector<64x32xbf16>, vector<32x32xf32> -> vector<32x32xf32>
    %c0_17 = arith.constant 0 : index
    %c0_18 = arith.constant 0 : index
    %22 = vector.load %arg7[%c0_17, %c0_18] : memref<1x32xf32, #tpu.memory_space<vmem>>, vector<1x32xf32>
    %23 = vector.broadcast %22 : vector<1x32xf32> to vector<32x32xf32>
    %24 = arith.addf %21, %23 : vector<32x32xf32>
    %cst_19 = arith.constant 0.000000e+00 : f32
    %25 = vector.broadcast %cst_19 : f32 to vector<32x32xf32>
    %26 = arith.maximumf %24, %25 : vector<32x32xf32>
    %27 = vector.shape_cast %26 : vector<32x32xf32> to vector<2x16x32xf32>
    %c0_20 = arith.constant 0 : index
    %c0_21 = arith.constant 0 : index
    %28 = vector.load %arg8[%c0_20, %c0_21] : memref<1x32xf32, #tpu.memory_space<vmem>>, vector<1x32xf32>
    %29 = vector.shape_cast %28 : vector<1x32xf32> to vector<1x1x32xf32>
    %30 = vector.broadcast %29 : vector<1x1x32xf32> to vector<2x16x32xf32>
    %31 = arith.mulf %27, %30 : vector<2x16x32xf32>
    %cst_22 = arith.constant dense<0.000000e+00> : vector<2x16xf32>
    %32 = vector.multi_reduction <add>, %31, %cst_22 [2] : vector<2x16x32xf32> to vector<2x16xf32>
    %33 = vector.shape_cast %32 : vector<2x16xf32> to vector<2x1x16xf32>
    %c0_23 = arith.constant 0 : index
    %c0_24 = arith.constant 0 : index
    %c0_25 = arith.constant 0 : index
    %34 = vector.load %arg9[%c0_23, %c0_24, %c0_25] : memref<2x1x16xf32, #tpu.memory_space<vmem>>, vector<2x1x16xf32>
    tpu.vector_store %arg9[%c0_23, %c0_24, %c0_25], %33 {strides = array<i32>} : memref<2x1x16xf32, #tpu.memory_space<vmem>>, vector<2x1x16xf32>,
    return
  }
  func.func @transform_0(%arg0: i32) -> (i32, i32, i32) {
    %c0_i32 = arith.constant 0 : i32
    %c0_i32_0 = arith.constant 0 : i32
    %c0_i32_1 = arith.constant 0 : i32
    return %arg0, %c0_i32, %c0_i32_0 : i32, i32, i32
  }
  func.func @transform_1(%arg0: i32) -> (i32, i32, i32) {
    %c0_i32 = arith.constant 0 : i32
    %c0_i32_0 = arith.constant 0 : i32
    %c0_i32_1 = arith.constant 0 : i32
    return %arg0, %c0_i32, %c0_i32_0 : i32, i32, i32
  }
  func.func @transform_2(%arg0: i32) -> (i32, i32) {
    %c0_i32 = arith.constant 0 : i32
    %c0_i32_0 = arith.constant 0 : i32
    %c0_i32_1 = arith.constant 0 : i32
    return %c0_i32, %c0_i32_0 : i32, i32
  }
  func.func @transform_3(%arg0: i32) -> (i32, i32) {
    %c0_i32 = arith.constant 0 : i32
    %c0_i32_0 = arith.constant 0 : i32
    %c0_i32_1 = arith.constant 0 : i32
    return %c0_i32, %c0_i32_0 : i32, i32
  }
  func.func @transform_4(%arg0: i32) -> (i32, i32) {
    %c0_i32 = arith.constant 0 : i32
    %c0_i32_0 = arith.constant 0 : i32
    %c0_i32_1 = arith.constant 0 : i32
    return %c0_i32, %c0_i32_0 : i32, i32
  }
  func.func @transform_5(%arg0: i32) -> (i32, i32) {
    %c0_i32 = arith.constant 0 : i32
    %c0_i32_0 = arith.constant 0 : i32
    %c0_i32_1 = arith.constant 0 : i32
    return %c0_i32, %c0_i32_0 : i32, i32
  }
  func.func @transform_6(%arg0: i32) -> (i32, i32) {
    %c0_i32 = arith.constant 0 : i32
    %c0_i32_0 = arith.constant 0 : i32
    %c0_i32_1 = arith.constant 0 : i32
    return %c0_i32, %c0_i32_0 : i32, i32
  }
  func.func @transform_7(%arg0: i32) -> (i32, i32) {
    %c0_i32 = arith.constant 0 : i32
    %c0_i32_0 = arith.constant 0 : i32
    %c0_i32_1 = arith.constant 0 : i32
    return %c0_i32, %c0_i32_0 : i32, i32
  }
  func.func @transform_8(%arg0: i32) -> (i32, i32, i32) {
    %c0_i32 = arith.constant 0 : i32
    %c0_i32_0 = arith.constant 0 : i32
    %c0_i32_1 = arith.constant 0 : i32
    return %arg0, %c0_i32, %c0_i32_0 : i32, i32, i32
  }
}

module attributes {stable_mosaic.version = 11 : i64} {
  func.func @_mlp_kernel(%arg0: i32, %arg1: memref<2x1x64xf32, #tpu.memory_space<vmem>>, %arg2: memref<2x16x32xbf16, #tpu.memory_space<vmem>>, %arg3: memref<32x64xbf16, #tpu.memory_space<vmem>>, %arg4: memref<64x64xbf16, #tpu.memory_space<vmem>>, %arg5: memref<1x64xf32, #tpu.memory_space<vmem>>, %arg6: memref<64x32xbf16, #tpu.memory_space<vmem>>, %arg7: memref<1x32xf32, #tpu.memory_space<vmem>>, %arg8: memref<1x32xf32, #tpu.memory_space<vmem>>, %arg9: memref<2x1x16xf32, #tpu.memory_space<vmem>>) attributes {dimension_semantics = [#tpu.dimension_semantics<parallel>], iteration_bounds = array<i64: 1>, scalar_prefetch = 0 : i64, scratch_operands = 0 : i64, tpu.core_type = #tpu.core_type<tc>, window_params = [{transform_indices = @transform_0, window_bounds = array<i64: 2, 1, 64>}, {transform_indices = @transform_1, window_bounds = array<i64: 2, 16, 32>}, {pipeline_mode = #tpu.pipeline_mode<synchronous>, transform_indices = @transform_2, window_bounds = array<i64: 32, 64>}, {pipeline_mode = #tpu.pipeline_mode<synchronous>, transform_indices = @transform_3, window_bounds = array<i64: 64, 64>}, {pipeline_mode = #tpu.pipeline_mode<synchronous>, transform_indices = @transform_4, window_bounds = array<i64: 1, 64>}, {pipeline_mode = #tpu.pipeline_mode<synchronous>, transform_indices = @transform_5, window_bounds = array<i64: 64, 32>}, {pipeline_mode = #tpu.pipeline_mode<synchronous>, transform_indices = @transform_6, window_bounds = array<i64: 1, 32>}, {pipeline_mode = #tpu.pipeline_mode<synchronous>, transform_indices = @transform_7, window_bounds = array<i64: 1, 32>}, {transform_indices = @transform_8, window_bounds = array<i64: 2, 1, 16>}]} {
    %c0 = arith.constant 0 : index
    %c0_0 = arith.constant 0 : index
    %c0_1 = arith.constant 0 : index
    %0 = vector.load %arg2[%c0, %c0_0, %c0_1] : memref<2x16x32xbf16, #tpu.memory_space<vmem>>, vector<2x16x32xbf16>
    %1 = vector.shape_cast %0 : vector<2x16x32xbf16> to vector<32x32xbf16>
    %c0_2 = arith.constant 0 : index
    %c0_3 = arith.constant 0 : index
    %2 = vector.load %arg3[%c0_2, %c0_3] : memref<32x64xbf16, #tpu.memory_space<vmem>>, vector<32x64xbf16>
    %cst = arith.constant dense<0.000000e+00> : vector<32x64xf32>
    %3 = tpu.matmul %1, %2, %cst {dimension_numbers = #tpu.dot_dimension_numbers<[1], [0], [0], [1], [0, 0, 1, 1], [], []>} : vector<32x32xbf16>, vector<32x64xbf16>, vector<32x64xf32> -> vector<32x64xf32>
    %4 = vector.shape_cast %3 : vector<32x64xf32> to vector<2x16x64xf32>
    %c0_4 = arith.constant 0 : index
    %c0_5 = arith.constant 0 : index
    %c0_6 = arith.constant 0 : index
    %5 = vector.load %arg1[%c0_4, %c0_5, %c0_6] : memref<2x1x64xf32, #tpu.memory_space<vmem>>, vector<2x1x64xf32>
    %6 = vector.broadcast %5 : vector<2x1x64xf32> to vector<2x16x64xf32>
    %7 = arith.addf %4, %6 : vector<2x16x64xf32>
    %cst_7 = arith.constant 0.000000e+00 : f32
    %8 = vector.broadcast %cst_7 : f32 to vector<2x16x64xf32>
    %9 = arith.maximumf %7, %8 : vector<2x16x64xf32>
    %10 = vector.shape_cast %9 : vector<2x16x64xf32> to vector<32x64xf32>
    %11 = arith.truncf %10 : vector<32x64xf32> to vector<32x64xbf16>
    %c0_8 = arith.constant 0 : index
    %c0_9 = arith.constant 0 : index
    %12 = vector.load %arg4[%c0_8, %c0_9] : memref<64x64xbf16, #tpu.memory_space<vmem>>, vector<64x64xbf16>
    %cst_10 = arith.constant dense<0.000000e+00> : vector<32x64xf32>
    %13 = tpu.matmul %11, %12, %cst_10 {dimension_numbers = #tpu.dot_dimension_numbers<[1], [0], [0], [1], [0, 0, 1, 1], [], []>} : vector<32x64xbf16>, vector<64x64xbf16>, vector<32x64xf32> -> vector<32x64xf32>
    %c0_11 = arith.constant 0 : index
    %c0_12 = arith.constant 0 : index
    %14 = vector.load %arg5[%c0_11, %c0_12] : memref<1x64xf32, #tpu.memory_space<vmem>>, vector<1x64xf32>
    %15 = vector.broadcast %14 : vector<1x64xf32> to vector<32x64xf32>
    %16 = arith.addf %13, %15 : vector<32x64xf32>
    %cst_13 = arith.constant 0.000000e+00 : f32
    %17 = vector.broadcast %cst_13 : f32 to vector<32x64xf32>
    %18 = arith.maximumf %16, %17 : vector<32x64xf32>
    %19 = arith.truncf %18 : vector<32x64xf32> to vector<32x64xbf16>
    %c0_14 = arith.constant 0 : index
    %c0_15 = arith.constant 0 : index
    %20 = vector.load %arg6[%c0_14, %c0_15] : memref<64x32xbf16, #tpu.memory_space<vmem>>, vector<64x32xbf16>
    %cst_16 = arith.constant dense<0.000000e+00> : vector<32x32xf32>
    %21 = tpu.matmul %19, %20, %cst_16 {dimension_numbers = #tpu.dot_dimension_numbers<[1], [0], [0], [1], [0, 0, 1, 1], [], []>} : vector<32x64xbf16>, vector<64x32xbf16>, vector<32x32xf32> -> vector<32x32xf32>
    %c0_17 = arith.constant 0 : index
    %c0_18 = arith.constant 0 : index
    %22 = vector.load %arg7[%c0_17, %c0_18] : memref<1x32xf32, #tpu.memory_space<vmem>>, vector<1x32xf32>
    %23 = vector.broadcast %22 : vector<1x32xf32> to vector<32x32xf32>
    %24 = arith.addf %21, %23 : vector<32x32xf32>
    %cst_19 = arith.constant 0.000000e+00 : f32
    %25 = vector.broadcast %cst_19 : f32 to vector<32x32xf32>
    %26 = arith.maximumf %24, %25 : vector<32x32xf32>
    %27 = vector.shape_cast %26 : vector<32x32xf32> to vector<2x16x32xf32>
    %c0_20 = arith.constant 0 : index
    %c0_21 = arith.constant 0 : index
    %28 = vector.load %arg8[%c0_20, %c0_21] : memref<1x32xf32, #tpu.memory_space<vmem>>, vector<1x32xf32>
    %29 = vector.shape_cast %28 : vector<1x32xf32> to vector<1x1x32xf32>
    %30 = vector.broadcast %29 : vector<1x1x32xf32> to vector<2x16x32xf32>
    %31 = arith.mulf %27, %30 : vector<2x16x32xf32>
    %cst_22 = arith.constant dense<0.000000e+00> : vector<2x16xf32>
    %32 = vector.multi_reduction <add>, %31, %cst_22 [2] : vector<2x16x32xf32> to vector<2x16xf32>
    %33 = vector.shape_cast %32 : vector<2x16xf32> to vector<2x1x16xf32>
    %c0_23 = arith.constant 0 : index
    %c0_24 = arith.constant 0 : index
    %c0_25 = arith.constant 0 : index
    %34 = vector.load %arg9[%c0_23, %c0_24, %c0_25] : memref<2x1x16xf32, #tpu.memory_space<vmem>>, vector<2x1x16xf32>
    tpu.vector_store %arg9[%c0_23, %c0_24, %c0_25], %33 {strides = array<i32>} : memref<2x1x16xf32, #tpu.memory_space<vmem>>, vector<2x1x16xf32>,
    return
  }
  func.func @transform_0(%arg0: i32) -> (i32, i32, i32) {
    %c0_i32 = arith.constant 0 : i32
    %c0_i32_0 = arith.constant 0 : i32
    %c0_i32_1 = arith.constant 0 : i32
    return %arg0, %c0_i32, %c0_i32_0 : i32, i32, i32
  }
  func.func @transform_1(%arg0: i32) -> (i32, i32, i32) {
    %c0_i32 = arith.constant 0 : i32
    %c0_i32_0 = arith.constant 0 : i32
    %c0_i32_1 = arith.constant 0 : i32
    return %arg0, %c0_i32, %c0_i32_0 : i32, i32, i32
  }
  func.func @transform_2(%arg0: i32) -> (i32, i32) {
    %c0_i32 = arith.constant 0 : i32
    %c0_i32_0 = arith.constant 0 : i32
    %c0_i32_1 = arith.constant 0 : i32
    return %c0_i32, %c0_i32_0 : i32, i32
  }
  func.func @transform_3(%arg0: i32) -> (i32, i32) {
    %c0_i32 = arith.constant 0 : i32
    %c0_i32_0 = arith.constant 0 : i32
    %c0_i32_1 = arith.constant 0 : i32
    return %c0_i32, %c0_i32_0 : i32, i32
  }
  func.func @transform_4(%arg0: i32) -> (i32, i32) {
    %c0_i32 = arith.constant 0 : i32
    %c0_i32_0 = arith.constant 0 : i32
    %c0_i32_1 = arith.constant 0 : i32
    return %c0_i32, %c0_i32_0 : i32, i32
  }
  func.func @transform_5(%arg0: i32) -> (i32, i32) {
    %c0_i32 = arith.constant 0 : i32
    %c0_i32_0 = arith.constant 0 : i32
    %c0_i32_1 = arith.constant 0 : i32
    return %c0_i32, %c0_i32_0 : i32, i32
  }
  func.func @transform_6(%arg0: i32) -> (i32, i32) {
    %c0_i32 = arith.constant 0 : i32
    %c0_i32_0 = arith.constant 0 : i32
    %c0_i32_1 = arith.constant 0 : i32
    return %c0_i32, %c0_i32_0 : i32, i32
  }
  func.func @transform_7(%arg0: i32) -> (i32, i32) {
    %c0_i32 = arith.constant 0 : i32
    %c0_i32_0 = arith.constant 0 : i32
    %c0_i32_1 = arith.constant 0 : i32
    return %c0_i32, %c0_i32_0 : i32, i32
  }
  func.func @transform_8(%arg0: i32) -> (i32, i32, i32) {
    %c0_i32 = arith.constant 0 : i32
    %c0_i32_0 = arith.constant 0 : i32
    %c0_i32_1 = arith.constant 0 : i32
    return %arg0, %c0_i32, %c0_i32_0 : i32, i32, i32
  }
}

</mosaic_0001>

<llo_original>
// kernel: tpu_custom_call.1
$region0: #{tpu_custom_call.1}
  #allocation0 [shape = 'u32[]', space=smem, size = 0x4, offset = 0x4, fixed_abs, tag = 'smem constant byte address 0x4 - core index']
  #allocation1 [shape = 'u32[144,128]{1,0:T(1,128)}', space=vmem, size = 0x12000, scoped, tag = 'internal scratch']
  %s0 = inlined_call_operand.vmem [shape: f32[2,1,64], index: 0, kind: input, shape index: {}]
  %s1 = inlined_call_operand.vmem [shape: bf16[2,16,32], index: 1, kind: input, shape index: {}]
  %s2 = inlined_call_operand.hbm [shape: bf16[32,64], index: 2, kind: input, shape index: {}]
  %s3 = inlined_call_operand.vmem [shape: bf16[64,64], index: 3, kind: input, shape index: {}]
  %s4 = inlined_call_operand.vmem [shape: f32[1,64], index: 4, kind: input, shape index: {}]
  %s5 = inlined_call_operand.vmem [shape: bf16[64,32], index: 5, kind: input, shape index: {}]
  %s6 = inlined_call_operand.vmem [shape: f32[1,32], index: 6, kind: input, shape index: {}]
  %s7 = inlined_call_operand.vmem [shape: f32[1,32], index: 7, kind: input, shape index: {}]
  %s8 = inlined_call_operand.hbm [shape: f32[2,1,16], index: 8, kind: output, shape index: {}]
  %s9 = sld [smem:[#allocation0]]
  $region46: #{tpu_custom_call.1} parent=0
    _
  %s11 = ssub.s32 1, %s9
  %s12 = scalar_select 0, %s11, %s9
  $region1: #{tpu_custom_call.1} parent=0
    #allocation2 [shape = 'u8[8192]{0}', space=vmem, size = 0x2000, scoped, tag = 'input window, operand 2, single buffered']
    #allocation3 [shape = 's32[1]{0}', space=sflag, size = 0x4, scoped, tag = 'scoped memory for tpu_custom_call.1']
    #allocation4 [shape = 's32[1]{0}', space=sflag, size = 0x4, scoped, tag = 'scoped memory for tpu_custom_call.1']
    #allocation5 [shape = 'u8[1024]{0}', space=vmem, size = 0x400, scoped, tag = 'output window, operand 0, single buffered']
    %13 = vsyncpa [#allocation3], 0
    %14 = vsyncpa [#allocation4], 0
    // Predicated region
    $region2: #{tpu_custom_call.1} parent=1 // pred_check
      _
    $region3: #{tpu_custom_call.1} parent=1 // pred_check_branch
      %16 = sbr.rel (0) target = $region5
    $region4: #{tpu_custom_call.1} parent=1 // pred_region
      _
    $region5: #{tpu_custom_call.1} parent=1 // pred_fallthru
      _
    // Predicated region
    $region6: #{tpu_custom_call.1} parent=1 // pred_check
      _
    $region7: #{tpu_custom_call.1} parent=1 // pred_check_branch
      %18 = sbr.rel (0) target = $region9
    $region8: #{tpu_custom_call.1} parent=1 // pred_region
      _
    $region9: #{tpu_custom_call.1} parent=1 // pred_fallthru
      _
    // Predicated region
    $region10: #{tpu_custom_call.1} parent=1 // pred_check
      _
    $region11: #{tpu_custom_call.1} parent=1 // pred_check_branch
      %20 = sbr.rel (0) target = $region13
    $region12: #{tpu_custom_call.1} parent=1 // pred_region
      %s22 = ssub.s32 256, 256
      %23 = vsyncadd [#allocation3], %s22
      %s24 = sshll.u32 [#allocation2], 4
      %s25 = int_to_ptr.vmem [resolvable:$true] %s24
      %30 = dma.hbm_to_vmem [thread:$0]  %s2, 256, %s25, [#allocation3], 64, 64, 4
    $region13: #{tpu_custom_call.1} parent=1 // pred_fallthru
      _
    // Predicated region
    $region14: #{tpu_custom_call.1} parent=1 // pred_check
      _
    $region15: #{tpu_custom_call.1} parent=1 // pred_check_branch
      %32 = sbr.rel (0) target = $region17
    $region16: #{tpu_custom_call.1} parent=1 // pred_region
      _
    $region17: #{tpu_custom_call.1} parent=1 // pred_fallthru
      _
    // Predicated region
    $region18: #{tpu_custom_call.1} parent=1 // pred_check
      _
    $region19: #{tpu_custom_call.1} parent=1 // pred_check_branch
      %34 = sbr.rel (0) target = $region21
    $region20: #{tpu_custom_call.1} parent=1 // pred_region
      _
    $region21: #{tpu_custom_call.1} parent=1 // pred_fallthru
      _
    // Predicated region
    $region22: #{tpu_custom_call.1} parent=1 // pred_check
      _
    $region23: #{tpu_custom_call.1} parent=1 // pred_check_branch
      %36 = sbr.rel (0) target = $region25
    $region24: #{tpu_custom_call.1} parent=1 // pred_region
      _
    $region25: #{tpu_custom_call.1} parent=1 // pred_fallthru
      _
    // Predicated region
    $region26: #{tpu_custom_call.1} parent=1 // pred_check
      _
    $region27: #{tpu_custom_call.1} parent=1 // pred_check_branch
      %38 = sbr.rel (0) target = $region29
    $region28: #{tpu_custom_call.1} parent=1 // pred_region
      _
    $region29: #{tpu_custom_call.1} parent=1 // pred_fallthru
      _
    // Predicated region
    $region30: #{tpu_custom_call.1} parent=1 // pred_check
      _
    $region31: #{tpu_custom_call.1} parent=1 // pred_check_branch
      %40 = sbr.rel (0) target = $region33
    $region32: #{tpu_custom_call.1} parent=1 // pred_region
      _
    $region33: #{tpu_custom_call.1} parent=1 // pred_fallthru
      _
    // Predicated region
    $region34: #{tpu_custom_call.1} parent=1 // pred_check
      _
    $region35: #{tpu_custom_call.1} parent=1 // pred_check_branch
      %42 = sbr.rel (0) target = $region37
    $region36: #{tpu_custom_call.1} parent=1 // pred_region
      %43 = dma.done [#allocation3], 256
    $region37: #{tpu_custom_call.1} parent=1 // pred_fallthru
      _
    %v45 = vld [vmem:[%s1] sm:$0xf]
    %v46 = vld [vmem:[%s1 + $0x4] sm:$0xf]
    %v47 = vld [vmem:[%s1 + $0x8] sm:$0xf]
    %v48 = vld [vmem:[%s1 + $0xc] sm:$0xf]
    %v49 = vld [vmem:[#allocation2] sm:$0xf]
    %v50 = vld [vmem:[#allocation2 + $0x4] sm:$0xf]
    %v51 = vld [vmem:[#allocation2 + $0x8] sm:$0xf]
    %v52 = vld [vmem:[#allocation2 + $0xc] sm:$0xf]
    %v57 = vunpack.c.l.b16 %v45
    %v58 = vunpack.c.l.b16 %v46
    %v59 = vunpack.c.l.b16 %v47
    %v60 = vunpack.c.l.b16 %v48
    %v61 = vpack.c.b16 %v58, %v57
    %v62 = vpack.c.b16 %v60, %v59
    %v67 = vunpack.c.l.b16 %v49
    %v68 = vunpack.c.l.b16 %v50
    %v69 = vunpack.c.l.b16 %v51
    %v70 = vunpack.c.l.b16 %v52
    %v71 = vpack.c.b16 %v68, %v67
    %v72 = vpack.c.b16 %v70, %v69
    %vm75 = vcmask 261120
    %v77 = vsel %vm75, %v61, 0
    %v80 = vsel %vm75, %v62, 0
    %82 = vmatprep.subr.bf16.mxu0 0
    %83 = vmatpush1.bf16.msra.mxu0 0
    %84 = vmatprep.subr.bf16.mxu0 0
    %85 = vmatpush1.bf16.msra.mxu0 0
    %86 = vmatprep.subr.bf16.mxu0 0
    %87 = vmatpush1.bf16.msra.mxu0 0
    %88 = vmatprep.subr.bf16.mxu0 0
    %89 = vmatpush1.bf16.msra.mxu0 0
    %90 = vmatprep.subr.bf16.mxu0 0
    %91 = vmatpush1.bf16.msra.mxu0 0
    %92 = vmatprep.subr.bf16.mxu0 0
    %93 = vmatpush1.bf16.msra.mxu0 0
    %94 = vmatprep.subr.bf16.mxu0 0
    %95 = vmatpush1.bf16.msra.mxu0 %v72
    %96 = vmatprep.subr.bf16.mxu0 0
    %97 = vmatpush1.bf16.msra.mxu0 %v71
    %98 = vmatprep.subr.bf16.mxu0 0
    %99 = vmatpush2.bf16.msra.mxu0 0
    %100 = vmatprep.subr.bf16.mxu0 0
    %101 = vmatpush2.bf16.msra.mxu0 0
    %102 = vmatprep.subr.bf16.mxu0 0
    %103 = vmatpush2.bf16.msra.mxu0 0
    %104 = vmatprep.subr.bf16.mxu0 0
    %105 = vmatpush2.bf16.msra.mxu0 0
    %106 = vmatprep.subr.bf16.mxu0 0
    %107 = vmatpush2.bf16.msra.mxu0 0
    %108 = vmatprep.subr.bf16.mxu0 0
    %109 = vmatpush2.bf16.msra.mxu0 0
    %110 = vmatprep.subr.bf16.mxu0 0
    %111 = vmatpush2.bf16.msra.mxu0 0
    %112 = vmatprep.subr.bf16.mxu0 0
    %113 = vmatpush2.bf16.msra.mxu0 0
    %114 = vmatprep.mubr.bf16.mxu0 0
    %115 = vmatmul.mubr.bf16.gmra.mxu0 %v77
    %v116 = vpop.f32.mrf.mxu0
    %v117 = vadd.f32 0.0, %v116
    %v118 = vpop.f32.mrf.mxu0
    %v119 = vpop.f32.mrf.mxu0
    %v120 = vadd.f32 0.0, %v119
    %v121 = vpop.f32.mrf.mxu0
    %122 = vmatprep.mubr.bf16.mxu0 0
    %123 = vmatmul.mubr.bf16.gmra.mxu0 %v80
    %v124 = vpop.f32.mrf.mxu0
    %v125 = vadd.f32 0.0, %v124
    %v126 = vpop.f32.mrf.mxu0
    %v127 = vpop.f32.mrf.mxu0
    %v128 = vadd.f32 0.0, %v127
    %v129 = vpop.f32.mrf.mxu0
    %130 = vdwg.mxu0
    %v131 = vld [vmem:[%s0] sm:$0x1]
    %v132 = vld [vmem:[%s0 + $0x1] sm:$0x1]
    %v135 = vlaneseq
    %v136 = vshrl.u32 %v135, 7
    %v137 = vsub.s32 0, %v136
    %v138 = vrot.slane %v131, %v137
    %v139 = vlaneseq
    %v140 = vshrl.u32 %v139, 7
    %v141 = vsub.s32 0, %v140
    %v142 = vrot.slane %v132, %v141
    %v145 = vadd.f32 %v117, %v138
    %v146 = vadd.f32 %v120, %v138
    %v147 = vadd.f32 %v125, %v142
    %v148 = vadd.f32 %v128, %v142
    %v149 = vmax.f32 %v145, 0.0
    %v150 = vmax.f32 %v146, 0.0
    %v151 = vmax.f32 %v147, 0.0
    %v152 = vmax.f32 %v148, 0.0
    %v153 = vpack.c.bf16 %v150, %v149
    %v154 = vpack.c.bf16 %v152, %v151
    %v155 = vld [vmem:[%s3] sm:$0xf]
    %v156 = vld [vmem:[%s3 + $0x4] sm:$0xf]
    %v157 = vld [vmem:[%s3 + $0x8] sm:$0xf]
    %v158 = vld [vmem:[%s3 + $0xc] sm:$0xf]
    %v159 = vld [vmem:[%s3 + $0x10] sm:$0xf]
    %v160 = vld [vmem:[%s3 + $0x14] sm:$0xf]
    %v161 = vld [vmem:[%s3 + $0x18] sm:$0xf]
    %v162 = vld [vmem:[%s3 + $0x1c] sm:$0xf]
    %v163 = vld [vmem:[%s4] sm:$0x1]
    %v165 = vlaneseq
    %v166 = vshrl.u32 %v165, 7
    %v167 = vsub.s32 0, %v166
    %v168 = vrot.slane %v163, %v167
    %v178 = vunpack.c.l.b16 %v155
    %v179 = vunpack.c.l.b16 %v156
    %v180 = vunpack.c.l.b16 %v157
    %v181 = vunpack.c.l.b16 %v158
    %v182 = vunpack.c.l.b16 %v159
    %v183 = vunpack.c.l.b16 %v160
    %v184 = vunpack.c.l.b16 %v161
    %v185 = vunpack.c.l.b16 %v162
    %v186 = vpack.c.b16 %v179, %v178
    %v187 = vpack.c.b16 %v181, %v180
    %v188 = vpack.c.b16 %v183, %v182
    %v189 = vpack.c.b16 %v185, %v184
    %vm194 = vcmask 523264
    %v196 = vsel %vm194, %v153, 0
    %v199 = vsel %vm194, %v154, 0
    %201 = vmatprep.subr.bf16.mxu0 0
    %202 = vmatpush1.bf16.msra.mxu0 0
    %203 = vmatprep.subr.bf16.mxu0 0
    %204 = vmatpush1.bf16.msra.mxu0 0
    %205 = vmatprep.subr.bf16.mxu0 0
    %206 = vmatpush1.bf16.msra.mxu0 0
    %207 = vmatprep.subr.bf16.mxu0 0
    %208 = vmatpush1.bf16.msra.mxu0 0
    %209 = vmatprep.subr.bf16.mxu0 0
    %210 = vmatpush1.bf16.msra.mxu0 %v189
    %211 = vmatprep.subr.bf16.mxu0 0
    %212 = vmatpush1.bf16.msra.mxu0 %v188
    %213 = vmatprep.subr.bf16.mxu0 0
    %214 = vmatpush1.bf16.msra.mxu0 %v187
    %215 = vmatprep.subr.bf16.mxu0 0
    %216 = vmatpush1.bf16.msra.mxu0 %v186
    %217 = vmatprep.subr.bf16.mxu0 0
    %218 = vmatpush2.bf16.msra.mxu0 0
    %219 = vmatprep.subr.bf16.mxu0 0
    %220 = vmatpush2.bf16.msra.mxu0 0
    %221 = vmatprep.subr.bf16.mxu0 0
    %222 = vmatpush2.bf16.msra.mxu0 0
    %223 = vmatprep.subr.bf16.mxu0 0
    %224 = vmatpush2.bf16.msra.mxu0 0
    %225 = vmatprep.subr.bf16.mxu0 0
    %226 = vmatpush2.bf16.msra.mxu0 0
    %227 = vmatprep.subr.bf16.mxu0 0
    %228 = vmatpush2.bf16.msra.mxu0 0
    %229 = vmatprep.subr.bf16.mxu0 0
    %230 = vmatpush2.bf16.msra.mxu0 0
    %231 = vmatprep.subr.bf16.mxu0 0
    %232 = vmatpush2.bf16.msra.mxu0 0
    %233 = vmatprep.mubr.bf16.mxu0 0
    %234 = vmatmul.mubr.bf16.gmra.mxu0 %v196
    %v235 = vpop.f32.mrf.mxu0
    %v236 = vadd.f32 %v168, %v235
    %v237 = vpop.f32.mrf.mxu0
    %v238 = vpop.f32.mrf.mxu0
    %v239 = vadd.f32 %v168, %v238
    %v240 = vpop.f32.mrf.mxu0
    %241 = vmatprep.mubr.bf16.mxu0 0
    %242 = vmatmul.mubr.bf16.gmra.mxu0 %v199
    %v243 = vpop.f32.mrf.mxu0
    %v244 = vadd.f32 %v168, %v243
    %v245 = vpop.f32.mrf.mxu0
    %v246 = vpop.f32.mrf.mxu0
    %v247 = vadd.f32 %v168, %v246
    %v248 = vpop.f32.mrf.mxu0
    %249 = vdwg.mxu0
    %v250 = vmax.f32 %v236, 0.0
    %v251 = vmax.f32 %v239, 0.0
    %v252 = vmax.f32 %v244, 0.0
    %v253 = vmax.f32 %v247, 0.0
    %v254 = vpack.c.bf16 %v251, %v250
    %v255 = vpack.c.bf16 %v253, %v252
    %v256 = vld [vmem:[%s5] sm:$0xf]
    %v257 = vld [vmem:[%s5 + $0x4] sm:$0xf]
    %v258 = vld [vmem:[%s5 + $0x8] sm:$0xf]
    %v259 = vld [vmem:[%s5 + $0xc] sm:$0xf]
    %v260 = vld [vmem:[%s5 + $0x10] sm:$0xf]
    %v261 = vld [vmem:[%s5 + $0x14] sm:$0xf]
    %v262 = vld [vmem:[%s5 + $0x18] sm:$0xf]
    %v263 = vld [vmem:[%s5 + $0x1c] sm:$0xf]
    %v264 = vld [vmem:[%s6] sm:$0x1]
    %v266 = vlaneseq
    %v267 = vshrl.u32 %v266, 7
    %v268 = vsub.s32 0, %v267
    %v269 = vrot.slane %v264, %v268
    %v279 = vunpack.c.l.b16 %v256
    %v280 = vunpack.c.l.b16 %v257
    %v281 = vunpack.c.l.b16 %v258
    %v282 = vunpack.c.l.b16 %v259
    %v283 = vunpack.c.l.b16 %v260
    %v284 = vunpack.c.l.b16 %v261
    %v285 = vunpack.c.l.b16 %v262
    %v286 = vunpack.c.l.b16 %v263
    %v287 = vpack.c.b16 %v280, %v279
    %v288 = vpack.c.b16 %v282, %v281
    %v289 = vpack.c.b16 %v284, %v283
    %v290 = vpack.c.b16 %v286, %v285
    %v296 = vsel %vm194, %v254, 0
    %v299 = vsel %vm194, %v255, 0
    %301 = vmatprep.subr.bf16.mxu0 0
    %302 = vmatpush1.bf16.msra.mxu0 0
    %303 = vmatprep.subr.bf16.mxu0 0
    %304 = vmatpush1.bf16.msra.mxu0 0
    %305 = vmatprep.subr.bf16.mxu0 0
    %306 = vmatpush1.bf16.msra.mxu0 0
    %307 = vmatprep.subr.bf16.mxu0 0
    %308 = vmatpush1.bf16.msra.mxu0 0
    %309 = vmatprep.subr.bf16.mxu0 0
    %310 = vmatpush1.bf16.msra.mxu0 %v290
    %311 = vmatprep.subr.bf16.mxu0 0
    %312 = vmatpush1.bf16.msra.mxu0 %v289
    %313 = vmatprep.subr.bf16.mxu0 0
    %314 = vmatpush1.bf16.msra.mxu0 %v288
    %315 = vmatprep.subr.bf16.mxu0 0
    %316 = vmatpush1.bf16.msra.mxu0 %v287
    %317 = vmatprep.subr.bf16.mxu0 0
    %318 = vmatpush2.bf16.msra.mxu0 0
    %319 = vmatprep.subr.bf16.mxu0 0
    %320 = vmatpush2.bf16.msra.mxu0 0
    %321 = vmatprep.subr.bf16.mxu0 0
    %322 = vmatpush2.bf16.msra.mxu0 0
    %323 = vmatprep.subr.bf16.mxu0 0
    %324 = vmatpush2.bf16.msra.mxu0 0
    %325 = vmatprep.subr.bf16.mxu0 0
    %326 = vmatpush2.bf16.msra.mxu0 0
    %327 = vmatprep.subr.bf16.mxu0 0
    %328 = vmatpush2.bf16.msra.mxu0 0
    %329 = vmatprep.subr.bf16.mxu0 0
    %330 = vmatpush2.bf16.msra.mxu0 0
    %331 = vmatprep.subr.bf16.mxu0 0
    %332 = vmatpush2.bf16.msra.mxu0 0
    %333 = vmatprep.mubr.bf16.mxu0 0
    %334 = vmatmul.mubr.bf16.gmra.mxu0 %v296
    %v335 = vpop.f32.mrf.mxu0
    %v336 = vadd.f32 %v269, %v335
    %v337 = vpop.f32.mrf.mxu0
    %v338 = vpop.f32.mrf.mxu0
    %v339 = vadd.f32 %v269, %v338
    %v340 = vpop.f32.mrf.mxu0
    %341 = vmatprep.mubr.bf16.mxu0 0
    %342 = vmatmul.mubr.bf16.gmra.mxu0 %v299
    %v343 = vpop.f32.mrf.mxu0
    %v344 = vadd.f32 %v269, %v343
    %v345 = vpop.f32.mrf.mxu0
    %v346 = vpop.f32.mrf.mxu0
    %v347 = vadd.f32 %v269, %v346
    %v348 = vpop.f32.mrf.mxu0
    %349 = vdwg.mxu0
    %v350 = vmax.f32 %v336, 0.0
    %v351 = vmax.f32 %v339, 0.0
    %v352 = vmax.f32 %v344, 0.0
    %v353 = vmax.f32 %v347, 0.0
    %v354 = vld [vmem:[%s7] sm:$0x1]
    %v356 = vlaneseq
    %v357 = vshrl.u32 %v356, 7
    %v358 = vsub.s32 0, %v357
    %v359 = vrot.slane %v354, %v358
    %v361 = vmul.f32 %v350, %v359
    %v362 = vmul.f32 %v351, %v359
    %v363 = vmul.f32 %v352, %v359
    %v364 = vmul.f32 %v353, %v359
    %v365 = vsel %vm75, %v361, 0.0
    %366 = vadd.xlane.f32.xlu0 %v365
    %v367 = vpop.xlane.xlu0 %366
    %v368 = vsel %vm75, %v362, 0.0
    %369 = vadd.xlane.f32.xlu0 %v368
    %v370 = vpop.xlane.xlu0 %369
    %v371 = vsel %vm75, %v363, 0.0
    %372 = vadd.xlane.f32.xlu0 %v371
    %v373 = vpop.xlane.xlu0 %372
    %v374 = vsel %vm75, %v364, 0.0
    %375 = vadd.xlane.f32.xlu0 %v374
    %v376 = vpop.xlane.xlu0 %375
    %v381 = vlaneseq
    %v382 = vand.u32 %v381, 127
    %v383 = vlaneseq
    %v384 = vshrl.u32 %v383, 7
    %v385 = vsub.s32 %v382, %v384
    %v386 = vrot.slane %v367, %v385
    %v387 = vadd.s32 %v382, 4294967288
    %v388 = vlaneseq
    %v389 = vshrl.u32 %v388, 7
    %v390 = vsub.s32 %v387, %v389
    %v391 = vrot.slane %v370, %v390
    %vm392 = vcmask 130112
    %v393 = vsel %vm392, %v391, %v386
    %v394 = vlaneseq
    %v395 = vshrl.u32 %v394, 7
    %v396 = vsub.s32 %v382, %v395
    %v397 = vrot.slane %v373, %v396
    %v398 = vlaneseq
    %v399 = vshrl.u32 %v398, 7
    %v400 = vsub.s32 %v387, %v399
    %v401 = vrot.slane %v376, %v400
    %v402 = vsel %vm392, %v401, %v397
    %vm405 = vcmask 122880
    %406 = vst.msk [vmem:[#allocation5] sm:$0x1] %vm405, %v393
    %407 = vst.msk [vmem:[#allocation5 + $0x1] sm:$0x1] %vm405, %v402
    // Predicated region
    $region38: #{tpu_custom_call.1} parent=1 // pred_check
      _
    $region39: #{tpu_custom_call.1} parent=1 // pred_check_branch
      %409 = sbr.rel (0) target = $region41
    $region40: #{tpu_custom_call.1} parent=1 // pred_region
      %s411 = ssub.s32 32, 32
      %412 = vsyncadd [#allocation4], %s411
      %s413 = sshll.u32 [#allocation5], 4
      %s414 = int_to_ptr.vmem [resolvable:$true] %s413
      %419 = dma.vmem_to_hbm [thread:$0]  %s414, 32, %s8, [#allocation4], 16, 16, 1
    $region41: #{tpu_custom_call.1} parent=1 // pred_fallthru
      _
    // Predicated region
    $region42: #{tpu_custom_call.1} parent=1 // pred_check
      _
    $region43: #{tpu_custom_call.1} parent=1 // pred_check_branch
      %421 = sbr.rel (0) target = $region45
    $region44: #{tpu_custom_call.1} parent=1 // pred_region
      %422 = dma.done [#allocation4], 32
    $region45: #{tpu_custom_call.1} parent=1 // pred_fallthru
      _
    %423 = vsyncpa [#allocation3], 1
    %424 = vsyncpa [#allocation4], 1

// kernel: tpu_custom_call.1
$region0: #{tpu_custom_call.1}
  #allocation0 [shape = 'u32[]', space=smem, size = 0x4, offset = 0x4, fixed_abs, tag = 'smem constant byte address 0x4 - core index']
  #allocation1 [shape = 'u32[144,128]{1,0:T(1,128)}', space=vmem, size = 0x12000, scoped, tag = 'internal scratch']
  %s0 = inlined_call_operand.vmem [shape: f32[2,1,64], index: 0, kind: input, shape index: {}]
  %s1 = inlined_call_operand.vmem [shape: bf16[2,16,32], index: 1, kind: input, shape index: {}]
  %s2 = inlined_call_operand.hbm [shape: bf16[32,64], index: 2, kind: input, shape index: {}]
  %s3 = inlined_call_operand.vmem [shape: bf16[64,64], index: 3, kind: input, shape index: {}]
  %s4 = inlined_call_operand.vmem [shape: f32[1,64], index: 4, kind: input, shape index: {}]
  %s5 = inlined_call_operand.vmem [shape: bf16[64,32], index: 5, kind: input, shape index: {}]
  %s6 = inlined_call_operand.vmem [shape: f32[1,32], index: 6, kind: input, shape index: {}]
  %s7 = inlined_call_operand.vmem [shape: f32[1,32], index: 7, kind: input, shape index: {}]
  %s8 = inlined_call_operand.hbm [shape: f32[2,1,16], index: 8, kind: output, shape index: {}]
  %s9 = sld [smem:[#allocation0]]
  $region46: #{tpu_custom_call.1} parent=0
    _
  %s11 = ssub.s32 1, %s9
  %s12 = scalar_select 0, %s11, %s9
  $region1: #{tpu_custom_call.1} parent=0
    #allocation2 [shape = 'u8[8192]{0}', space=vmem, size = 0x2000, scoped, tag = 'input window, operand 2, single buffered']
    #allocation3 [shape = 's32[1]{0}', space=sflag, size = 0x4, scoped, tag = 'scoped memory for tpu_custom_call.1']
    #allocation4 [shape = 's32[1]{0}', space=sflag, size = 0x4, scoped, tag = 'scoped memory for tpu_custom_call.1']
    #allocation5 [shape = 'u8[1024]{0}', space=vmem, size = 0x400, scoped, tag = 'output window, operand 0, single buffered']
    %13 = vsyncpa [#allocation3], 0
    %14 = vsyncpa [#allocation4], 0
    // Predicated region
    $region2: #{tpu_custom_call.1} parent=1 // pred_check
      _
    $region3: #{tpu_custom_call.1} parent=1 // pred_check_branch
      %16 = sbr.rel (0) target = $region5
    $region4: #{tpu_custom_call.1} parent=1 // pred_region
      _
    $region5: #{tpu_custom_call.1} parent=1 // pred_fallthru
      _
    // Predicated region
    $region6: #{tpu_custom_call.1} parent=1 // pred_check
      _
    $region7: #{tpu_custom_call.1} parent=1 // pred_check_branch
      %18 = sbr.rel (0) target = $region9
    $region8: #{tpu_custom_call.1} parent=1 // pred_region
      _
    $region9: #{tpu_custom_call.1} parent=1 // pred_fallthru
      _
    // Predicated region
    $region10: #{tpu_custom_call.1} parent=1 // pred_check
      _
    $region11: #{tpu_custom_call.1} parent=1 // pred_check_branch
      %20 = sbr.rel (0) target = $region13
    $region12: #{tpu_custom_call.1} parent=1 // pred_region
      %s22 = ssub.s32 256, 256
      %23 = vsyncadd [#allocation3], %s22
      %s24 = sshll.u32 [#allocation2], 4
      %s25 = int_to_ptr.vmem [resolvable:$true] %s24
      %30 = dma.hbm_to_vmem [thread:$0]  %s2, 256, %s25, [#allocation3], 64, 64, 4
    $region13: #{tpu_custom_call.1} parent=1 // pred_fallthru
      _
    // Predicated region
    $region14: #{tpu_custom_call.1} parent=1 // pred_check
      _
    $region15: #{tpu_custom_call.1} parent=1 // pred_check_branch
      %32 = sbr.rel (0) target = $region17
    $region16: #{tpu_custom_call.1} parent=1 // pred_region
      _
    $region17: #{tpu_custom_call.1} parent=1 // pred_fallthru
      _
    // Predicated region
    $region18: #{tpu_custom_call.1} parent=1 // pred_check
      _
    $region19: #{tpu_custom_call.1} parent=1 // pred_check_branch
      %34 = sbr.rel (0) target = $region21
    $region20: #{tpu_custom_call.1} parent=1 // pred_region
      _
    $region21: #{tpu_custom_call.1} parent=1 // pred_fallthru
      _
    // Predicated region
    $region22: #{tpu_custom_call.1} parent=1 // pred_check
      _
    $region23: #{tpu_custom_call.1} parent=1 // pred_check_branch
      %36 = sbr.rel (0) target = $region25
    $region24: #{tpu_custom_call.1} parent=1 // pred_region
      _
    $region25: #{tpu_custom_call.1} parent=1 // pred_fallthru
      _
    // Predicated region
    $region26: #{tpu_custom_call.1} parent=1 // pred_check
      _
    $region27: #{tpu_custom_call.1} parent=1 // pred_check_branch
      %38 = sbr.rel (0) target = $region29
    $region28: #{tpu_custom_call.1} parent=1 // pred_region
      _
    $region29: #{tpu_custom_call.1} parent=1 // pred_fallthru
      _
    // Predicated region
    $region30: #{tpu_custom_call.1} parent=1 // pred_check
      _
    $region31: #{tpu_custom_call.1} parent=1 // pred_check_branch
      %40 = sbr.rel (0) target = $region33
    $region32: #{tpu_custom_call.1} parent=1 // pred_region
      _
    $region33: #{tpu_custom_call.1} parent=1 // pred_fallthru
      _
    // Predicated region
    $region34: #{tpu_custom_call.1} parent=1 // pred_check
      _
    $region35: #{tpu_custom_call.1} parent=1 // pred_check_branch
      %42 = sbr.rel (0) target = $region37
    $region36: #{tpu_custom_call.1} parent=1 // pred_region
      %43 = dma.done [#allocation3], 256
    $region37: #{tpu_custom_call.1} parent=1 // pred_fallthru
      _
    %v45 = vld [vmem:[%s1] sm:$0xf]
    %v46 = vld [vmem:[%s1 + $0x4] sm:$0xf]
    %v47 = vld [vmem:[%s1 + $0x8] sm:$0xf]
    %v48 = vld [vmem:[%s1 + $0xc] sm:$0xf]
    %v49 = vld [vmem:[#allocation2] sm:$0xf]
    %v50 = vld [vmem:[#allocation2 + $0x4] sm:$0xf]
    %v51 = vld [vmem:[#allocation2 + $0x8] sm:$0xf]
    %v52 = vld [vmem:[#allocation2 + $0xc] sm:$0xf]
    %v57 = vunpack.c.l.b16 %v45
    %v58 = vunpack.c.l.b16 %v46
    %v59 = vunpack.c.l.b16 %v47
    %v60 = vunpack.c.l.b16 %v48
    %v61 = vpack.c.b16 %v58, %v57
    %v62 = vpack.c.b16 %v60, %v59
    %v67 = vunpack.c.l.b16 %v49
    %v68 = vunpack.c.l.b16 %v50
    %v69 = vunpack.c.l.b16 %v51
    %v70 = vunpack.c.l.b16 %v52
    %v71 = vpack.c.b16 %v68, %v67
    %v72 = vpack.c.b16 %v70, %v69
    %vm75 = vcmask 261120
    %v77 = vsel %vm75, %v61, 0
    %v80 = vsel %vm75, %v62, 0
    %82 = vmatprep.subr.bf16.mxu0 0
    %83 = vmatpush1.bf16.msra.mxu0 0
    %84 = vmatprep.subr.bf16.mxu0 0
    %85 = vmatpush1.bf16.msra.mxu0 0
    %86 = vmatprep.subr.bf16.mxu0 0
    %87 = vmatpush1.bf16.msra.mxu0 0
    %88 = vmatprep.subr.bf16.mxu0 0
    %89 = vmatpush1.bf16.msra.mxu0 0
    %90 = vmatprep.subr.bf16.mxu0 0
    %91 = vmatpush1.bf16.msra.mxu0 0
    %92 = vmatprep.subr.bf16.mxu0 0
    %93 = vmatpush1.bf16.msra.mxu0 0
    %94 = vmatprep.subr.bf16.mxu0 0
    %95 = vmatpush1.bf16.msra.mxu0 %v72
    %96 = vmatprep.subr.bf16.mxu0 0
    %97 = vmatpush1.bf16.msra.mxu0 %v71
    %98 = vmatprep.subr.bf16.mxu0 0
    %99 = vmatpush2.bf16.msra.mxu0 0
    %100 = vmatprep.subr.bf16.mxu0 0
    %101 = vmatpush2.bf16.msra.mxu0 0
    %102 = vmatprep.subr.bf16.mxu0 0
    %103 = vmatpush2.bf16.msra.mxu0 0
    %104 = vmatprep.subr.bf16.mxu0 0
    %105 = vmatpush2.bf16.msra.mxu0 0
    %106 = vmatprep.subr.bf16.mxu0 0
    %107 = vmatpush2.bf16.msra.mxu0 0
    %108 = vmatprep.subr.bf16.mxu0 0
    %109 = vmatpush2.bf16.msra.mxu0 0
    %110 = vmatprep.subr.bf16.mxu0 0
    %111 = vmatpush2.bf16.msra.mxu0 0
    %112 = vmatprep.subr.bf16.mxu0 0
    %113 = vmatpush2.bf16.msra.mxu0 0
    %114 = vmatprep.mubr.bf16.mxu0 0
    %115 = vmatmul.mubr.bf16.gmra.mxu0 %v77
    %v116 = vpop.f32.mrf.mxu0
    %v117 = vadd.f32 0.0, %v116
    %v118 = vpop.f32.mrf.mxu0
    %v119 = vpop.f32.mrf.mxu0
    %v120 = vadd.f32 0.0, %v119
    %v121 = vpop.f32.mrf.mxu0
    %122 = vmatprep.mubr.bf16.mxu0 0
    %123 = vmatmul.mubr.bf16.gmra.mxu0 %v80
    %v124 = vpop.f32.mrf.mxu0
    %v125 = vadd.f32 0.0, %v124
    %v126 = vpop.f32.mrf.mxu0
    %v127 = vpop.f32.mrf.mxu0
    %v128 = vadd.f32 0.0, %v127
    %v129 = vpop.f32.mrf.mxu0
    %130 = vdwg.mxu0
    %v131 = vld [vmem:[%s0] sm:$0x1]
    %v132 = vld [vmem:[%s0 + $0x1] sm:$0x1]
    %v135 = vlaneseq
    %v136 = vshrl.u32 %v135, 7
    %v137 = vsub.s32 0, %v136
    %v138 = vrot.slane %v131, %v137
    %v139 = vlaneseq
    %v140 = vshrl.u32 %v139, 7
    %v141 = vsub.s32 0, %v140
    %v142 = vrot.slane %v132, %v141
    %v145 = vadd.f32 %v117, %v138
    %v146 = vadd.f32 %v120, %v138
    %v147 = vadd.f32 %v125, %v142
    %v148 = vadd.f32 %v128, %v142
    %v149 = vmax.f32 %v145, 0.0
    %v150 = vmax.f32 %v146, 0.0
    %v151 = vmax.f32 %v147, 0.0
    %v152 = vmax.f32 %v148, 0.0
    %v153 = vpack.c.bf16 %v150, %v149
    %v154 = vpack.c.bf16 %v152, %v151
    %v155 = vld [vmem:[%s3] sm:$0xf]
    %v156 = vld [vmem:[%s3 + $0x4] sm:$0xf]
    %v157 = vld [vmem:[%s3 + $0x8] sm:$0xf]
    %v158 = vld [vmem:[%s3 + $0xc] sm:$0xf]
    %v159 = vld [vmem:[%s3 + $0x10] sm:$0xf]
    %v160 = vld [vmem:[%s3 + $0x14] sm:$0xf]
    %v161 = vld [vmem:[%s3 + $0x18] sm:$0xf]
    %v162 = vld [vmem:[%s3 + $0x1c] sm:$0xf]
    %v163 = vld [vmem:[%s4] sm:$0x1]
    %v165 = vlaneseq
    %v166 = vshrl.u32 %v165, 7
    %v167 = vsub.s32 0, %v166
    %v168 = vrot.slane %v163, %v167
    %v178 = vunpack.c.l.b16 %v155
    %v179 = vunpack.c.l.b16 %v156
    %v180 = vunpack.c.l.b16 %v157
    %v181 = vunpack.c.l.b16 %v158
    %v182 = vunpack.c.l.b16 %v159
    %v183 = vunpack.c.l.b16 %v160
    %v184 = vunpack.c.l.b16 %v161
    %v185 = vunpack.c.l.b16 %v162
    %v186 = vpack.c.b16 %v179, %v178
    %v187 = vpack.c.b16 %v181, %v180
    %v188 = vpack.c.b16 %v183, %v182
    %v189 = vpack.c.b16 %v185, %v184
    %vm194 = vcmask 523264
    %v196 = vsel %vm194, %v153, 0
    %v199 = vsel %vm194, %v154, 0
    %201 = vmatprep.subr.bf16.mxu0 0
    %202 = vmatpush1.bf16.msra.mxu0 0
    %203 = vmatprep.subr.bf16.mxu0 0
    %204 = vmatpush1.bf16.msra.mxu0 0
    %205 = vmatprep.subr.bf16.mxu0 0
    %206 = vmatpush1.bf16.msra.mxu0 0
    %207 = vmatprep.subr.bf16.mxu0 0
    %208 = vmatpush1.bf16.msra.mxu0 0
    %209 = vmatprep.subr.bf16.mxu0 0
    %210 = vmatpush1.bf16.msra.mxu0 %v189
    %211 = vmatprep.subr.bf16.mxu0 0
    %212 = vmatpush1.bf16.msra.mxu0 %v188
    %213 = vmatprep.subr.bf16.mxu0 0
    %214 = vmatpush1.bf16.msra.mxu0 %v187
    %215 = vmatprep.subr.bf16.mxu0 0
    %216 = vmatpush1.bf16.msra.mxu0 %v186
    %217 = vmatprep.subr.bf16.mxu0 0
    %218 = vmatpush2.bf16.msra.mxu0 0
    %219 = vmatprep.subr.bf16.mxu0 0
    %220 = vmatpush2.bf16.msra.mxu0 0
    %221 = vmatprep.subr.bf16.mxu0 0
    %222 = vmatpush2.bf16.msra.mxu0 0
    %223 = vmatprep.subr.bf16.mxu0 0
    %224 = vmatpush2.bf16.msra.mxu0 0
    %225 = vmatprep.subr.bf16.mxu0 0
    %226 = vmatpush2.bf16.msra.mxu0 0
    %227 = vmatprep.subr.bf16.mxu0 0
    %228 = vmatpush2.bf16.msra.mxu0 0
    %229 = vmatprep.subr.bf16.mxu0 0
    %230 = vmatpush2.bf16.msra.mxu0 0
    %231 = vmatprep.subr.bf16.mxu0 0
    %232 = vmatpush2.bf16.msra.mxu0 0
    %233 = vmatprep.mubr.bf16.mxu0 0
    %234 = vmatmul.mubr.bf16.gmra.mxu0 %v196
    %v235 = vpop.f32.mrf.mxu0
    %v236 = vadd.f32 %v168, %v235
    %v237 = vpop.f32.mrf.mxu0
    %v238 = vpop.f32.mrf.mxu0
    %v239 = vadd.f32 %v168, %v238
    %v240 = vpop.f32.mrf.mxu0
    %241 = vmatprep.mubr.bf16.mxu0 0
    %242 = vmatmul.mubr.bf16.gmra.mxu0 %v199
    %v243 = vpop.f32.mrf.mxu0
    %v244 = vadd.f32 %v168, %v243
    %v245 = vpop.f32.mrf.mxu0
    %v246 = vpop.f32.mrf.mxu0
    %v247 = vadd.f32 %v168, %v246
    %v248 = vpop.f32.mrf.mxu0
    %249 = vdwg.mxu0
    %v250 = vmax.f32 %v236, 0.0
    %v251 = vmax.f32 %v239, 0.0
    %v252 = vmax.f32 %v244, 0.0
    %v253 = vmax.f32 %v247, 0.0
    %v254 = vpack.c.bf16 %v251, %v250
    %v255 = vpack.c.bf16 %v253, %v252
    %v256 = vld [vmem:[%s5] sm:$0xf]
    %v257 = vld [vmem:[%s5 + $0x4] sm:$0xf]
    %v258 = vld [vmem:[%s5 + $0x8] sm:$0xf]
    %v259 = vld [vmem:[%s5 + $0xc] sm:$0xf]
    %v260 = vld [vmem:[%s5 + $0x10] sm:$0xf]
    %v261 = vld [vmem:[%s5 + $0x14] sm:$0xf]
    %v262 = vld [vmem:[%s5 + $0x18] sm:$0xf]
    %v263 = vld [vmem:[%s5 + $0x1c] sm:$0xf]
    %v264 = vld [vmem:[%s6] sm:$0x1]
    %v266 = vlaneseq
    %v267 = vshrl.u32 %v266, 7
    %v268 = vsub.s32 0, %v267
    %v269 = vrot.slane %v264, %v268
    %v279 = vunpack.c.l.b16 %v256
    %v280 = vunpack.c.l.b16 %v257
    %v281 = vunpack.c.l.b16 %v258
    %v282 = vunpack.c.l.b16 %v259
    %v283 = vunpack.c.l.b16 %v260
    %v284 = vunpack.c.l.b16 %v261
    %v285 = vunpack.c.l.b16 %v262
    %v286 = vunpack.c.l.b16 %v263
    %v287 = vpack.c.b16 %v280, %v279
    %v288 = vpack.c.b16 %v282, %v281
    %v289 = vpack.c.b16 %v284, %v283
    %v290 = vpack.c.b16 %v286, %v285
    %v296 = vsel %vm194, %v254, 0
    %v299 = vsel %vm194, %v255, 0
    %301 = vmatprep.subr.bf16.mxu0 0
    %302 = vmatpush1.bf16.msra.mxu0 0
    %303 = vmatprep.subr.bf16.mxu0 0
    %304 = vmatpush1.bf16.msra.mxu0 0
    %305 = vmatprep.subr.bf16.mxu0 0
    %306 = vmatpush1.bf16.msra.mxu0 0
    %307 = vmatprep.subr.bf16.mxu0 0
    %308 = vmatpush1.bf16.msra.mxu0 0
    %309 = vmatprep.subr.bf16.mxu0 0
    %310 = vmatpush1.bf16.msra.mxu0 %v290
    %311 = vmatprep.subr.bf16.mxu0 0
    %312 = vmatpush1.bf16.msra.mxu0 %v289
    %313 = vmatprep.subr.bf16.mxu0 0
    %314 = vmatpush1.bf16.msra.mxu0 %v288
    %315 = vmatprep.subr.bf16.mxu0 0
    %316 = vmatpush1.bf16.msra.mxu0 %v287
    %317 = vmatprep.subr.bf16.mxu0 0
    %318 = vmatpush2.bf16.msra.mxu0 0
    %319 = vmatprep.subr.bf16.mxu0 0
    %320 = vmatpush2.bf16.msra.mxu0 0
    %321 = vmatprep.subr.bf16.mxu0 0
    %322 = vmatpush2.bf16.msra.mxu0 0
    %323 = vmatprep.subr.bf16.mxu0 0
    %324 = vmatpush2.bf16.msra.mxu0 0
    %325 = vmatprep.subr.bf16.mxu0 0
    %326 = vmatpush2.bf16.msra.mxu0 0
    %327 = vmatprep.subr.bf16.mxu0 0
    %328 = vmatpush2.bf16.msra.mxu0 0
    %329 = vmatprep.subr.bf16.mxu0 0
    %330 = vmatpush2.bf16.msra.mxu0 0
    %331 = vmatprep.subr.bf16.mxu0 0
    %332 = vmatpush2.bf16.msra.mxu0 0
    %333 = vmatprep.mubr.bf16.mxu0 0
    %334 = vmatmul.mubr.bf16.gmra.mxu0 %v296
    %v335 = vpop.f32.mrf.mxu0
    %v336 = vadd.f32 %v269, %v335
    %v337 = vpop.f32.mrf.mxu0
    %v338 = vpop.f32.mrf.mxu0
    %v339 = vadd.f32 %v269, %v338
    %v340 = vpop.f32.mrf.mxu0
    %341 = vmatprep.mubr.bf16.mxu0 0
    %342 = vmatmul.mubr.bf16.gmra.mxu0 %v299
    %v343 = vpop.f32.mrf.mxu0
    %v344 = vadd.f32 %v269, %v343
    %v345 = vpop.f32.mrf.mxu0
    %v346 = vpop.f32.mrf.mxu0
    %v347 = vadd.f32 %v269, %v346
    %v348 = vpop.f32.mrf.mxu0
    %349 = vdwg.mxu0
    %v350 = vmax.f32 %v336, 0.0
    %v351 = vmax.f32 %v339, 0.0
    %v352 = vmax.f32 %v344, 0.0
    %v353 = vmax.f32 %v347, 0.0
    %v354 = vld [vmem:[%s7] sm:$0x1]
    %v356 = vlaneseq
    %v357 = vshrl.u32 %v356, 7
    %v358 = vsub.s32 0, %v357
    %v359 = vrot.slane %v354, %v358
    %v361 = vmul.f32 %v350, %v359
    %v362 = vmul.f32 %v351, %v359
    %v363 = vmul.f32 %v352, %v359
    %v364 = vmul.f32 %v353, %v359
    %v365 = vsel %vm75, %v361, 0.0
    %366 = vadd.xlane.f32.xlu0 %v365
    %v367 = vpop.xlane.xlu0 %366
    %v368 = vsel %vm75, %v362, 0.0
    %369 = vadd.xlane.f32.xlu0 %v368
    %v370 = vpop.xlane.xlu0 %369
    %v371 = vsel %vm75, %v363, 0.0
    %372 = vadd.xlane.f32.xlu0 %v371
    %v373 = vpop.xlane.xlu0 %372
    %v374 = vsel %vm75, %v364, 0.0
    %375 = vadd.xlane.f32.xlu0 %v374
    %v376 = vpop.xlane.xlu0 %375
    %v381 = vlaneseq
    %v382 = vand.u32 %v381, 127
    %v383 = vlaneseq
    %v384 = vshrl.u32 %v383, 7
    %v385 = vsub.s32 %v382, %v384
    %v386 = vrot.slane %v367, %v385
    %v387 = vadd.s32 %v382, 4294967288
    %v388 = vlaneseq
    %v389 = vshrl.u32 %v388, 7
    %v390 = vsub.s32 %v387, %v389
    %v391 = vrot.slane %v370, %v390
    %vm392 = vcmask 130112
    %v393 = vsel %vm392, %v391, %v386
    %v394 = vlaneseq
    %v395 = vshrl.u32 %v394, 7
    %v396 = vsub.s32 %v382, %v395
    %v397 = vrot.slane %v373, %v396
    %v398 = vlaneseq
    %v399 = vshrl.u32 %v398, 7
    %v400 = vsub.s32 %v387, %v399
    %v401 = vrot.slane %v376, %v400
    %v402 = vsel %vm392, %v401, %v397
    %vm405 = vcmask 122880
    %406 = vst.msk [vmem:[#allocation5] sm:$0x1] %vm405, %v393
    %407 = vst.msk [vmem:[#allocation5 + $0x1] sm:$0x1] %vm405, %v402
    // Predicated region
    $region38: #{tpu_custom_call.1} parent=1 // pred_check
      _
    $region39: #{tpu_custom_call.1} parent=1 // pred_check_branch
      %409 = sbr.rel (0) target = $region41
    $region40: #{tpu_custom_call.1} parent=1 // pred_region
      %s411 = ssub.s32 32, 32
      %412 = vsyncadd [#allocation4], %s411
      %s413 = sshll.u32 [#allocation5], 4
      %s414 = int_to_ptr.vmem [resolvable:$true] %s413
      %419 = dma.vmem_to_hbm [thread:$0]  %s414, 32, %s8, [#allocation4], 16, 16, 1
    $region41: #{tpu_custom_call.1} parent=1 // pred_fallthru
      _
    // Predicated region
    $region42: #{tpu_custom_call.1} parent=1 // pred_check
      _
    $region43: #{tpu_custom_call.1} parent=1 // pred_check_branch
      %421 = sbr.rel (0) target = $region45
    $region44: #{tpu_custom_call.1} parent=1 // pred_region
      %422 = dma.done [#allocation4], 32
    $region45: #{tpu_custom_call.1} parent=1 // pred_fallthru
      _
    %423 = vsyncpa [#allocation3], 1
    %424 = vsyncpa [#allocation4], 1

</llo_original>
